<compile_context>
chip_gen: v7x
topology: tpu7x:2x2x1
jax: 0.10.0
libtpu: 0.0.40
codegen_flags: <defaults>
</compile_context>

<pallas_src>
import jax
import jax.numpy as jnp
from jax import lax
from jax.experimental import pallas as pl
from jax.experimental.pallas import tpu as pltpu


_VMEM_BUDGET = 40 * 2**20  # per-tile working-set target (headroom on v7x 64 MiB/TC)


def _cdiv(a, b):
    return (a + b - 1) // b


def _vmem_estimate(tb, in_dim, hid, x_bytes, w_bytes):
    return (2 * tb * in_dim * x_bytes      # x tile, double buffered
            + in_dim * hid * w_bytes       # w1^T resident, single buffered
            + 2 * hid * w_bytes            # b1 row + w2 row, single buffered
            + 2 * 2 * tb * 4               # (1, TB) f32 output, double buffered
            + 2 * tb * hid * 4)            # (TB, H) f32 activation headroom


def _make_kernel(tb, batch):
    """batch = true number of rows; tb * num_tiles may exceed it."""

    def kernel(x_ref, w1_ref, b1_ref, w2_ref, b2_ref, out_ref):
        # lin1: one MXU matmul per batch tile (f32 accumulation), ReLU on VPU.
        h = jnp.dot(x_ref[...], w1_ref[...], preferred_element_type=jnp.float32)
        h = jnp.maximum(h + b1_ref[...], 0.0)                       # (TB, H)
        # lin2 (out_features == 1): VPU multiply + cross-lane reduce, then lay
        # the per-row results along the lane axis (XLU transpose — that slot is
        # idle here) so the output store is lane-dense.
        y_col = jnp.sum(h * w2_ref[...], axis=-1, keepdims=True)    # (TB, 1)
        y_row = jnp.transpose(y_col, (1, 0)) + b2_ref[0]            # (1, TB)
        # Mask rows past the true batch: the last tile may be partial and its
        # out-of-range input rows hold garbage, so zero them before the store.
        row = pl.program_id(0) * tb + lax.broadcasted_iota(jnp.int32, (1, tb), 1)
        y_row = jnp.where(row < batch, y_row, 0.0)
        out_ref[...] = y_row.astype(out_ref.dtype)

    return kernel


def linear_lag_decoder(x, w1, b1, w2, b2, *, block_b=512):
    """Forward pass of LinearLagDecoder: lin2(relu(lin1(x))).

    x : (..., input_dim)
    w1: (hidden, input_dim), b1: (hidden,)   -- PyTorch nn.Linear layout
    w2: (1, hidden),         b2: (1,)
    returns (..., 1) in x's dtype.
    """
    orig_shape = x.shape
    in_dim = orig_shape[-1]
    hid = w1.shape[0]
    assert w1.shape == (hid, in_dim) and w2.shape == (1, hid)
    assert b1.shape == (hid,) and b2.shape == (1,)

    # Flatten leading dims; keep the caller's dtype (feed bf16 x/w1 on v6e/v7x
    # for ~2x on the mem-bound x stream).  No forced f32 upcast, no jnp.pad.
    x2 = x.reshape(-1, in_dim)
    batch = x2.shape[0]
    x_bytes = x2.dtype.itemsize
    w_bytes = jnp.dtype(w1.dtype).itemsize

    # Batch-tile selection.
    if batch <= block_b:
        # One tile covering the whole (unpadded) batch: every block equals the
        # full array extent -> single grid step, no tail handling needed.
        tb = batch
    else:
        # Lane-dense (1, tb) output blocks require tb % 128 == 0; shrink if the
        # per-tile working set would blow the VMEM budget.
        tb = max(128, (block_b // 128) * 128)
        while tb > 128 and _vmem_estimate(tb, in_dim, hid, x_bytes, w_bytes) > _VMEM_BUDGET:
            tb //= 2
    num_tiles = _cdiv(batch, tb)
    padded = num_tiles * tb          # output lanes only; x itself is NOT padded

    # Parameter layout glue (plain JAX, outside the kernel).
    w1_t = jnp.transpose(w1)                     # (in_dim, hid)
    b1_row = b1.reshape(1, hid)                  # (1, hid)
    w2_row = w2.reshape(1, hid)                  # (1, hid)
    b2_s = b2.reshape(1).astype(jnp.float32)     # scalar -> SMEM

    resident = pl.Buffered(1)                    # constant index_map => 1 buffer
    grid_spec = pltpu.PrefetchScalarGridSpec(
        num_scalar_prefetch=0,
        grid=(num_tiles,),
        in_specs=[
            pl.BlockSpec((tb, in_dim), lambda i: (i, 0)),                 # x tile
            pl.BlockSpec((in_dim, hid), lambda i: (0, 0), pipeline_mode=resident),
            pl.BlockSpec((1, hid), lambda i: (0, 0), pipeline_mode=resident),
            pl.BlockSpec((1, hid), lambda i: (0, 0), pipeline_mode=resident),
            pl.BlockSpec(memory_space=pltpu.MemorySpace.SMEM),            # b2
        ],
        out_specs=pl.BlockSpec((1, tb), lambda i: (0, i)),                # lane-dense
    )

    # Explicit scoped-VMEM limit (32..48 MiB): above the v5e 16 MiB default,
    # below v7x's 64 MiB per TensorCore.
    # NOTE: for very large (in_dim, hid) weights the hidden dim should also be
    # tiled in-kernel; unnecessary at decoder-sized shapes.
    est = _vmem_estimate(tb, in_dim, hid, x_bytes, w_bytes)
    vmem_limit = int(min(48 * 2**20, max(2 * est + 4 * 2**20, 32 * 2**20)))

    out = pl.pallas_call(
        _make_kernel(tb, batch),
        out_shape=jax.ShapeDtypeStruct((1, padded), x2.dtype),
        grid_spec=grid_spec,
        compiler_params=pltpu.CompilerParams(
            dimension_semantics=("parallel",),   # batch tiles independent
            vmem_limit_bytes=vmem_limit,
        ),
    )(x2, w1_t, b1_row, w2_row, b2_s)

    return out[0, :batch].reshape(orig_shape[:-1] + (1,))


def _reference(x, w1, b1, w2, b2):
    """Pure-JAX reference matching the PyTorch LinearLagDecoder forward."""
    h = jnp.maximum(x @ w1.T + b1, 0.0)
    return h @ w2.T + b2


if __name__ == "__main__":
    # Small, module-consistent shapes: batch=2, input_dim=16, hidden=32.
    B, I, H = 2, 16, 32
    key = jax.random.PRNGKey(0)
    ks = jax.random.split(key, 6)
    s1 = 1.0 / jnp.sqrt(I)   # PyTorch default init ranges
    s2 = 1.0 / jnp.sqrt(H)

    x = jax.random.normal(ks[0], (B, I), jnp.float32)
    w1 = jax.random.uniform(ks[1], (H, I), jnp.float32, -s1, s1)
    b1 = jax.random.uniform(ks[2], (H,), jnp.float32, -s1, s1)
    w2 = jax.random.uniform(ks[3], (1, H), jnp.float32, -s2, s2)
    b2 = jax.random.uniform(ks[4], (1,), jnp.float32, -s2, s2)

    out = linear_lag_decoder(x, w1, b1, w2, b2)
    out = jax.block_until_ready(out)
    ref = _reference(x, w1, b1, w2, b2)
    assert out.shape == (B, 1), out.shape
    assert jnp.allclose(out, ref, atol=1e-5, rtol=1e-5), (out, ref)

    # Multi-tile + partial-last-tile path (no padding of x, in-kernel tail mask).
    B2 = 300
    x_big = jax.random.normal(ks[5], (B2, I), jnp.float32)
    out_big = linear_lag_decoder(x_big, w1, b1, w2, b2, block_b=128)
    out_big = jax.block_until_ready(out_big)
    ref_big = _reference(x_big, w1, b1, w2, b2)
    assert out_big.shape == (B2, 1), out_big.shape
    assert jnp.allclose(out_big, ref_big, atol=1e-5, rtol=1e-5)

    print("KERNEL_OK")
</pallas_src>

<mosaic_0001>
module attributes {stable_mosaic.version = 11 : i64} {
  func.func @kernel(%arg0: i32, %arg1: memref<2x16xf32, #tpu.memory_space<vmem>>, %arg2: memref<16x32xf32, #tpu.memory_space<vmem>>, %arg3: memref<1x32xf32, #tpu.memory_space<vmem>>, %arg4: memref<1x32xf32, #tpu.memory_space<vmem>>, %arg5: memref<1xf32, #tpu.memory_space<smem>>, %arg6: memref<1x2xf32, #tpu.memory_space<vmem>>) attributes {dimension_semantics = [#tpu.dimension_semantics<parallel>], iteration_bounds = array<i64: 1>, scalar_prefetch = 0 : i64, scratch_operands = 0 : i64, tpu.core_type = #tpu.core_type<tc>, window_params = [{transform_indices = @transform_0, window_bounds = array<i64: 2, 16>}, {pipeline_mode = #tpu.pipeline_mode<synchronous>, transform_indices = @transform_1, window_bounds = array<i64: 16, 32>}, {pipeline_mode = #tpu.pipeline_mode<synchronous>, transform_indices = @transform_2, window_bounds = array<i64: 1, 32>}, {pipeline_mode = #tpu.pipeline_mode<synchronous>, transform_indices = @transform_3, window_bounds = array<i64: 1, 32>}, {transform_indices = @transform_4, window_bounds = array<i64: 1>}, {transform_indices = @transform_5, window_bounds = array<i64: 1, 2>}]} {
    %c0 = arith.constant 0 : index
    %c0_0 = arith.constant 0 : index
    %0 = vector.load %arg1[%c0, %c0_0] : memref<2x16xf32, #tpu.memory_space<vmem>>, vector<2x16xf32>
    %c0_1 = arith.constant 0 : index
    %c0_2 = arith.constant 0 : index
    %1 = vector.load %arg2[%c0_1, %c0_2] : memref<16x32xf32, #tpu.memory_space<vmem>>, vector<16x32xf32>
    %cst = arith.constant dense<0.000000e+00> : vector<2x32xf32>
    %2 = tpu.matmul %0, %1, %cst {dimension_numbers = #tpu.dot_dimension_numbers<[1], [0], [0], [1], [0, 0, 1, 1], [], []>} : vector<2x16xf32>, vector<16x32xf32>, vector<2x32xf32> -> vector<2x32xf32>
    %c0_3 = arith.constant 0 : index
    %c0_4 = arith.constant 0 : index
    %3 = vector.load %arg3[%c0_3, %c0_4] : memref<1x32xf32, #tpu.memory_space<vmem>>, vector<1x32xf32>
    %4 = vector.broadcast %3 : vector<1x32xf32> to vector<2x32xf32>
    %5 = arith.addf %2, %4 : vector<2x32xf32>
    %cst_5 = arith.constant 0.000000e+00 : f32
    %6 = vector.broadcast %cst_5 : f32 to vector<2x32xf32>
    %7 = arith.maximumf %5, %6 : vector<2x32xf32>
    %c0_6 = arith.constant 0 : index
    %c0_7 = arith.constant 0 : index
    %8 = vector.load %arg4[%c0_6, %c0_7] : memref<1x32xf32, #tpu.memory_space<vmem>>, vector<1x32xf32>
    %9 = vector.broadcast %8 : vector<1x32xf32> to vector<2x32xf32>
    %10 = arith.mulf %7, %9 : vector<2x32xf32>
    %cst_8 = arith.constant dense<0.000000e+00> : vector<2xf32>
    %11 = vector.multi_reduction <add>, %10, %cst_8 [1] : vector<2x32xf32> to vector<2xf32>
    %12 = vector.shape_cast %11 : vector<2xf32> to vector<2x1xf32>
    %13 = tpu.transpose %12, [1, 0] : vector<2x1xf32> -> vector<1x2xf32>
    %c0_9 = arith.constant 0 : index
    %14 = memref.load %arg5[%c0_9] : memref<1xf32, #tpu.memory_space<smem>>
    %15 = vector.broadcast %14 : f32 to vector<1x2xf32>
    %16 = arith.addf %13, %15 : vector<1x2xf32>
    %c2_i32 = arith.constant 2 : i32
    %17 = arith.muli %arg0, %c2_i32 : i32
    %18 = tpu.iota {dimensions = array<i32: 1>} : vector<1x2xi32>
    %19 = vector.broadcast %17 : i32 to vector<1x2xi32>
    %20 = arith.addi %19, %18 : vector<1x2xi32>
    %c2_i32_10 = arith.constant 2 : i32
    %21 = vector.broadcast %c2_i32_10 : i32 to vector<1x2xi32>
    %22 = arith.cmpi slt, %20, %21 : vector<1x2xi32>
    %cst_11 = arith.constant 0.000000e+00 : f32
    %23 = vector.broadcast %cst_11 : f32 to vector<1x2xf32>
    %24 = arith.select %22, %16, %23 : vector<1x2xi1>, vector<1x2xf32>
    %c0_12 = arith.constant 0 : index
    %c0_13 = arith.constant 0 : index
    %25 = vector.load %arg6[%c0_12, %c0_13] : memref<1x2xf32, #tpu.memory_space<vmem>>, vector<1x2xf32>
    tpu.vector_store %arg6[%c0_12, %c0_13], %24 {strides = array<i32>} : memref<1x2xf32, #tpu.memory_space<vmem>>, vector<1x2xf32>,
    return
  }
  func.func @transform_0(%arg0: i32) -> (i32, i32) {
    %c0_i32 = arith.constant 0 : i32
    %c0_i32_0 = arith.constant 0 : i32
    return %arg0, %c0_i32 : i32, i32
  }
  func.func @transform_1(%arg0: i32) -> (i32, i32) {
    %c0_i32 = arith.constant 0 : i32
    %c0_i32_0 = arith.constant 0 : i32
    %c0_i32_1 = arith.constant 0 : i32
    return %c0_i32, %c0_i32_0 : i32, i32
  }
  func.func @transform_2(%arg0: i32) -> (i32, i32) {
    %c0_i32 = arith.constant 0 : i32
    %c0_i32_0 = arith.constant 0 : i32
    %c0_i32_1 = arith.constant 0 : i32
    return %c0_i32, %c0_i32_0 : i32, i32
  }
  func.func @transform_3(%arg0: i32) -> (i32, i32) {
    %c0_i32 = arith.constant 0 : i32
    %c0_i32_0 = arith.constant 0 : i32
    %c0_i32_1 = arith.constant 0 : i32
    return %c0_i32, %c0_i32_0 : i32, i32
  }
  func.func @transform_4(%arg0: i32) -> i32 {
    %c0_i32 = arith.constant 0 : i32
    %c0_i32_0 = arith.constant 0 : i32
    return %c0_i32 : i32
  }
  func.func @transform_5(%arg0: i32) -> (i32, i32) {
    %c0_i32 = arith.constant 0 : i32
    %c0_i32_0 = arith.constant 0 : i32
    return %c0_i32, %arg0 : i32, i32
  }
}

</mosaic_0001>

<llo_original>
// kernel: tpu_custom_call.1
$region0: #{tpu_custom_call.1}
  #allocation0 [shape = 'u32[]', space=smem, size = 0x4, offset = 0x4, fixed_abs, tag = 'smem constant byte address 0x4 - core index']
  #allocation1 [shape = 'u32[144,128]{1,0:T(1,128)}', space=vmem, size = 0x12000, scoped, tag = 'internal scratch']
  #allocation2 [shape = 'f32[1]{0:T(128)S(6)}', space=smem, size = 0x200, scoped, tag = 'scoped memory for tpu_custom_call.1']
  %s0 = inlined_call_operand.vmem [shape: f32[2,16], index: 0, kind: input, shape index: {}]
  %s1 = inlined_call_operand.hbm [shape: f32[16,32], index: 1, kind: input, shape index: {}]
  %s2 = inlined_call_operand.vmem [shape: f32[1,32], index: 2, kind: input, shape index: {}]
  %s3 = inlined_call_operand.vmem [shape: f32[1,32], index: 3, kind: input, shape index: {}]
  %s4 = inlined_call_operand.<no memory space> [shape: f32[1], index: 4, kind: input, shape index: {}]
  %s5 = inlined_call_operand.hbm [shape: f32[1,2], index: 5, kind: output, shape index: {}]
  %s6 = sld [smem:[#allocation0]]
  $region34: #{tpu_custom_call.1} parent=0
    _
  %s8 = ssub.s32 1, %s6
  %s9 = scalar_select 0, %s8, %s6
  %10 = sst [smem:[#allocation2]] %s4
  $region1: #{tpu_custom_call.1} parent=0
    #allocation3 [shape = 'u8[8192]{0}', space=vmem, size = 0x2000, scoped, tag = 'input window, operand 1, single buffered']
    #allocation4 [shape = 's32[1]{0}', space=sflag, size = 0x4, scoped, tag = 'scoped memory for tpu_custom_call.1']
    #allocation5 [shape = 's32[1]{0}', space=sflag, size = 0x4, scoped, tag = 'scoped memory for tpu_custom_call.1']
    #allocation6 [shape = 'u8[512]{0}', space=vmem, size = 0x400, scoped, tag = 'output window, operand 0, single buffered']
    %11 = vsyncpa [#allocation4], 0
    %12 = vsyncpa [#allocation5], 0
    // Predicated region
    $region2: #{tpu_custom_call.1} parent=1 // pred_check
      _
    $region3: #{tpu_custom_call.1} parent=1 // pred_check_branch
      %14 = sbr.rel (0) target = $region5
    $region4: #{tpu_custom_call.1} parent=1 // pred_region
      _
    $region5: #{tpu_custom_call.1} parent=1 // pred_fallthru
      _
    // Predicated region
    $region6: #{tpu_custom_call.1} parent=1 // pred_check
      _
    $region7: #{tpu_custom_call.1} parent=1 // pred_check_branch
      %16 = sbr.rel (0) target = $region9
    $region8: #{tpu_custom_call.1} parent=1 // pred_region
      %s18 = ssub.s32 256, 256
      %19 = vsyncadd [#allocation4], %s18
      %s20 = sshll.u32 [#allocation3], 4
      %s21 = int_to_ptr.vmem [resolvable:$true] %s20
      %26 = dma.hbm_to_vmem [thread:$0]  %s1, 256, %s21, [#allocation4], 128, 128, 8
    $region9: #{tpu_custom_call.1} parent=1 // pred_fallthru
      _
    // Predicated region
    $region10: #{tpu_custom_call.1} parent=1 // pred_check
      _
    $region11: #{tpu_custom_call.1} parent=1 // pred_check_branch
      %28 = sbr.rel (0) target = $region13
    $region12: #{tpu_custom_call.1} parent=1 // pred_region
      _
    $region13: #{tpu_custom_call.1} parent=1 // pred_fallthru
      _
    // Predicated region
    $region14: #{tpu_custom_call.1} parent=1 // pred_check
      _
    $region15: #{tpu_custom_call.1} parent=1 // pred_check_branch
      %30 = sbr.rel (0) target = $region17
    $region16: #{tpu_custom_call.1} parent=1 // pred_region
      _
    $region17: #{tpu_custom_call.1} parent=1 // pred_fallthru
      _
    // Predicated region
    $region18: #{tpu_custom_call.1} parent=1 // pred_check
      _
    $region19: #{tpu_custom_call.1} parent=1 // pred_check_branch
      %32 = sbr.rel (0) target = $region21
    $region20: #{tpu_custom_call.1} parent=1 // pred_region
      _
    $region21: #{tpu_custom_call.1} parent=1 // pred_fallthru
      _
    // Predicated region
    $region22: #{tpu_custom_call.1} parent=1 // pred_check
      _
    $region23: #{tpu_custom_call.1} parent=1 // pred_check_branch
      %34 = sbr.rel (0) target = $region25
    $region24: #{tpu_custom_call.1} parent=1 // pred_region
      %35 = dma.done [#allocation4], 256
    $region25: #{tpu_custom_call.1} parent=1 // pred_fallthru
      _
    %v36 = vld [vmem:[%s0] sm:$0x3]
    %v37 = vld [vmem:[#allocation3] sm:$0xff]
    %v38 = vld [vmem:[#allocation3 + $0x8] sm:$0xff]
    %v39 = vld [vmem:[%s2] sm:$0x1]
    %v41 = vlaneseq
    %v42 = vshrl.u32 %v41, 7
    %v43 = vsub.s32 0, %v42
    %v44 = vrot.slane %v39, %v43
    %vm46 = vcmask 130048
    %v48 = vsel %vm46, %v36, 0
    %50 = vmatprep.subr.mxu0 0.0
    %51 = vmatpush1.msra.mxu0 %v37
    %52 = vmatprep.subr.mxu0 0.0
    %53 = vmatpush1.msra.mxu0 %v38
    %54 = vmatprep.subr.mxu0 0.0
    %55 = vmatpush1.msra.mxu0 0.0
    %56 = vmatprep.subr.mxu0 0.0
    %57 = vmatpush1.msra.mxu0 0.0
    %58 = vmatprep.subr.mxu0 0.0
    %59 = vmatpush1.msra.mxu0 0.0
    %60 = vmatprep.subr.mxu0 0.0
    %61 = vmatpush1.msra.mxu0 0.0
    %62 = vmatprep.subr.mxu0 0.0
    %63 = vmatpush1.msra.mxu0 0.0
    %64 = vmatprep.subr.mxu0 0.0
    %65 = vmatpush1.msra.mxu0 0.0
    %66 = vmatprep.subr.mxu0 0.0
    %67 = vmatpush1.msra.mxu0 0.0
    %68 = vmatprep.subr.mxu0 0.0
    %69 = vmatpush1.msra.mxu0 0.0
    %70 = vmatprep.subr.mxu0 0.0
    %71 = vmatpush1.msra.mxu0 0.0
    %72 = vmatprep.subr.mxu0 0.0
    %73 = vmatpush1.msra.mxu0 0.0
    %74 = vmatprep.subr.mxu0 0.0
    %75 = vmatpush1.msra.mxu0 0.0
    %76 = vmatprep.subr.mxu0 0.0
    %77 = vmatpush1.msra.mxu0 0.0
    %78 = vmatprep.subr.mxu0 0.0
    %79 = vmatpush1.msra.mxu0 0.0
    %80 = vmatprep.subr.mxu0 0.0
    %81 = vmatpush1.msra.mxu0 0.0
    %82 = vmatprep.subr.mxu0 0.0
    %83 = vmatpush1.msra.mxu0 0.0
    %84 = vmatprep.subr.mxu0 0.0
    %85 = vmatpush1.msra.mxu0 0.0
    %86 = vmatprep.subr.mxu0 0.0
    %87 = vmatpush1.msra.mxu0 0.0
    %88 = vmatprep.subr.mxu0 0.0
    %89 = vmatpush1.msra.mxu0 0.0
    %90 = vmatprep.subr.mxu0 0.0
    %91 = vmatpush1.msra.mxu0 0.0
    %92 = vmatprep.subr.mxu0 0.0
    %93 = vmatpush1.msra.mxu0 0.0
    %94 = vmatprep.subr.mxu0 0.0
    %95 = vmatpush1.msra.mxu0 0.0
    %96 = vmatprep.subr.mxu0 0.0
    %97 = vmatpush1.msra.mxu0 0.0
    %98 = vmatprep.subr.mxu0 0.0
    %99 = vmatpush1.msra.mxu0 0.0
    %100 = vmatprep.subr.mxu0 0.0
    %101 = vmatpush1.msra.mxu0 0.0
    %102 = vmatprep.subr.mxu0 0.0
    %103 = vmatpush1.msra.mxu0 0.0
    %104 = vmatprep.subr.mxu0 0.0
    %105 = vmatpush1.msra.mxu0 0.0
    %106 = vmatprep.subr.mxu0 0.0
    %107 = vmatpush1.msra.mxu0 0.0
    %108 = vmatprep.subr.mxu0 0.0
    %109 = vmatpush1.msra.mxu0 0.0
    %110 = vmatprep.subr.mxu0 0.0
    %111 = vmatpush1.msra.mxu0 0.0
    %112 = vmatprep.subr.mxu0 0.0
    %113 = vmatpush1.msra.mxu0 0.0
    %114 = vmatprep.mubr.f32.mxu0 0.0
    %115 = vmatmul.mubr.f32.gmra.mrb[0].mxu0 %v48
    %v116 = vpop.f32.mrb[0].mxu0
    %v117 = vadd.f32 %v44, %v116
    %v118 = vpop.f32.mrb[0].mxu0
    %119 = vdwg.mxu0
    %v120 = vmax.f32 %v117, 0.0
    %v121 = vld [vmem:[%s3] sm:$0x1]
    %v123 = vlaneseq
    %v124 = vshrl.u32 %v123, 7
    %v125 = vsub.s32 0, %v124
    %v126 = vrot.slane %v121, %v125
    %v128 = vmul.f32 %v120, %v126
    %vm129 = vcmask 254976
    %v130 = vsel %vm129, %v128, 0.0
    %131 = vadd.xlane.f32.xlu0 %v130
    %v132 = vpop.xlane.xlu0 %131
    %133 = vxpose.xlu0.b32.start [1/16] %v132, 128
    %134 = vxpose.xlu0.b32.cont [2/16] 0.0, 128
    %135 = vxpose.xlu0.b32.cont [3/16] 0.0, 128
    %136 = vxpose.xlu0.b32.cont [4/16] 0.0, 128
    %137 = vxpose.xlu0.b32.cont [5/16] 0.0, 128
    %138 = vxpose.xlu0.b32.cont [6/16] 0.0, 128
    %139 = vxpose.xlu0.b32.cont [7/16] 0.0, 128
    %140 = vxpose.xlu0.b32.cont [8/16] 0.0, 128
    %141 = vxpose.xlu0.b32.cont [9/16] 0.0, 128
    %142 = vxpose.xlu0.b32.cont [10/16] 0.0, 128
    %143 = vxpose.xlu0.b32.cont [11/16] 0.0, 128
    %144 = vxpose.xlu0.b32.cont [12/16] 0.0, 128
    %145 = vxpose.xlu0.b32.cont [13/16] 0.0, 128
    %146 = vxpose.xlu0.b32.cont [14/16] 0.0, 128
    %147 = vxpose.xlu0.b32.cont [15/16] 0.0, 128
    %148 = vxpose.xlu0.b32.end [16/16] 0.0, 128
    %v149 = vpop.trf.xlu0
    %v150 = vpop.trf.xlu0
    %v151 = vpop.trf.xlu0
    %v152 = vpop.trf.xlu0
    %v153 = vpop.trf.xlu0
    %v154 = vpop.trf.xlu0
    %v155 = vpop.trf.xlu0
    %v156 = vpop.trf.xlu0
    %v157 = vpop.trf.xlu0
    %v158 = vpop.trf.xlu0
    %v159 = vpop.trf.xlu0
    %v160 = vpop.trf.xlu0
    %v161 = vpop.trf.xlu0
    %v162 = vpop.trf.xlu0
    %v163 = vpop.trf.xlu0
    %v164 = vpop.trf.xlu0
    %s165 = sld [smem:[#allocation2]]
    %v166 = vstv %s165
    %v167 = vadd.f32 %v149, %v166
    %s168 = smul.u32 0, 2
    %v169 = vlaneseq
    %v170 = vand.u32 %v169, 127
    %v171 = vstv %s168
    %v172 = vadd.s32 %v171, %v170
    %vm173 = vcmp.lt.s32.totalorder %v172, 2
    %v174 = vsel %vm173, %v167, 0.0
    %vm175 = vcmask 8192
    %176 = vst.msk [vmem:[#allocation6] sm:$0x1] %vm175, %v174
    // Predicated region
    $region26: #{tpu_custom_call.1} parent=1 // pred_check
      _
    $region27: #{tpu_custom_call.1} parent=1 // pred_check_branch
      %178 = sbr.rel (0) target = $region29
    $region28: #{tpu_custom_call.1} parent=1 // pred_region
      %s180 = ssub.s32 16, 16
      %181 = vsyncadd [#allocation5], %s180
      %s183 = sshll.u32 [#allocation6], 4
      %s184 = int_to_ptr.vmem [resolvable:$true] %s183
      %186 = dma.vmem_to_hbm [thread:$0]  %s184, 16, %s5, [#allocation5]
    $region29: #{tpu_custom_call.1} parent=1 // pred_fallthru
      _
    // Predicated region
    $region30: #{tpu_custom_call.1} parent=1 // pred_check
      _
    $region31: #{tpu_custom_call.1} parent=1 // pred_check_branch
      %188 = sbr.rel (0) target = $region33
    $region32: #{tpu_custom_call.1} parent=1 // pred_region
      %189 = dma.done [#allocation5], 16
    $region33: #{tpu_custom_call.1} parent=1 // pred_fallthru
      _
    %190 = vsyncpa [#allocation4], 1
    %191 = vsyncpa [#allocation5], 1

</llo_original>
